<compile_context>
chip_gen: v5e
topology: v5e:2x2
jax: 0.10.0
libtpu: 0.0.40
codegen_flags: <defaults>
</compile_context>

<pallas_src>
import functools

import jax
import jax.numpy as jnp
from jax.experimental import pallas as pl
from jax.experimental.pallas import tpu as pltpu

_LANE = 128
_MAX_TS = 2048


def _cdiv(a, b):
    return -(-a // b)


def _round_up(x, m):
    return _cdiv(x, m) * m


def _vmem_params():
    """Generation-aware (input-block budget, scoped vmem limit) in bytes."""
    phys = 64 * 1024 * 1024  # conservative fallback (v7x-sized)
    try:
        info = pltpu.get_tpu_info()
        phys = int(getattr(info, "vmem_capacity_bytes", phys))
    except Exception:
        pass
    budget = (phys * 3) // 8  # ~48 MiB on v5e/v6e (128 MiB VMEM), ~24 MiB on v7x (64 MiB)
    limit = phys // 2         # scoped limit: 64 MiB / 32 MiB
    return budget, limit


def _choose_tiles(S, C, flow_item, mask_item, n_acc, budget):
    """Pick (TS sublanes per tile, P spatial splits, WT tiles per split)."""
    if S <= 8:
        return S, 1, 1                                   # full-extent block (always legal)
    in_row = _LANE * (2 * C * flow_item + mask_item)     # input bytes per sublane row
    acc_row = _LANE * 4 * n_acc                          # f32 scratch accumulators
    row_bytes = 2 * in_row + acc_row                     # inputs double-buffered
    ts_cap = budget // max(row_bytes, 1)
    ts_cap = max(8, min(_MAX_TS, (ts_cap // 8) * 8))
    P = 2 if S >= 16 else 1                              # keep both v7x TCs busy for small N
    wt_total = max(P, _cdiv(S, ts_cap))
    WT = _cdiv(wt_total, P)
    total = P * WT
    if total == 1:
        return S, 1, 1
    TS = _round_up(_cdiv(S, total), 8)                   # balanced tiles, no dead full tiles
    return TS, P, WT


def _l2_masked_kernel(flow_ref, pred_ref, mask_ref, err_out_ref, msum_out_ref,
                      err_acc, mask_acc, *, valid_rows):
    """flow/pred: (1,C,TS,128); mask: (1,TS,128); outputs: (1,1,1,128) per (n,p);
    err_acc/mask_acc: (TS,128) f32 VMEM scratch accumulators."""
    p = pl.program_id(1)
    w = pl.program_id(2)
    nw = pl.num_programs(2)
    TS, LANE = err_acc.shape

    @pl.when(w == 0)
    def _():
        err_acc[...] = jnp.zeros_like(err_acc)
        mask_acc[...] = jnp.zeros_like(mask_acc)

    C = flow_ref.shape[1]
    sq = None
    for c in range(C):  # channel reduction unrolled on the VPU (C small & static)
        d = flow_ref[0, c, :, :].astype(jnp.float32) - pred_ref[0, c, :, :].astype(jnp.float32)
        sq = d * d if sq is None else sq + d * d
    err = jnp.sqrt(sq)                                   # (TS,128), EUP
    m = mask_ref[0].astype(jnp.float32)

    # Tail / clamped-block masking: rows beyond the true sublane count are
    # unspecified garbage -> select (not multiply) so NaNs never propagate.
    row0 = (p * nw + w) * TS
    rows = jax.lax.broadcasted_iota(jnp.int32, (TS, LANE), 0) + row0
    valid = rows < valid_rows

    err_acc[...] += jnp.where(valid, err * m, 0.0)
    mask_acc[...] += jnp.where(valid, m, 0.0)

    @pl.when(w == nw - 1)
    def _():
        err_out_ref[...] = jnp.sum(err_acc[...], axis=0, keepdims=True)[None, None]
        msum_out_ref[...] = jnp.sum(mask_acc[...], axis=0, keepdims=True)[None, None]


def _l2_unmasked_kernel(flow_ref, pred_ref, err_out_ref, err_acc, *, valid_rows):
    """Unmasked variant: no mask stream (saves HBM traffic)."""
    p = pl.program_id(1)
    w = pl.program_id(2)
    nw = pl.num_programs(2)
    TS, LANE = err_acc.shape

    @pl.when(w == 0)
    def _():
        err_acc[...] = jnp.zeros_like(err_acc)

    C = flow_ref.shape[1]
    sq = None
    for c in range(C):
        d = flow_ref[0, c, :, :].astype(jnp.float32) - pred_ref[0, c, :, :].astype(jnp.float32)
        sq = d * d if sq is None else sq + d * d
    err = jnp.sqrt(sq)

    row0 = (p * nw + w) * TS
    rows = jax.lax.broadcasted_iota(jnp.int32, (TS, LANE), 0) + row0
    valid = rows < valid_rows

    err_acc[...] += jnp.where(valid, err, 0.0)

    @pl.when(w == nw - 1)
    def _():
        err_out_ref[...] = jnp.sum(err_acc[...], axis=0, keepdims=True)[None, None]


@jax.jit
def my_l2_loss(flow_pred, flow, mask=None):
    """Pallas implementation of MyL2Loss.forward.

    flow_pred, flow : (N, C, H, W)   (output['flow'], target['flow'])
    mask            : (N, H, W) or None
    Returns a scalar float32 loss.
    """
    N, C, H, W = flow.shape
    HW = H * W
    S = _cdiv(HW, _LANE)                       # sublane rows of the lane-dense view
    has_mask = mask is not None

    flow_item = jnp.dtype(flow.dtype).itemsize
    mask_item = jnp.dtype(mask.dtype).itemsize if has_mask else 0
    n_acc = 2 if has_mask else 1

    budget, vmem_limit = _vmem_params()
    TS, P, WT = _choose_tiles(S, C, flow_item, mask_item, n_acc, budget)
    max_blk = _cdiv(S, TS) - 1                 # clamp target for overshooting grid steps
    grid = (N, P, WT)

    def _to_lanes(x, lead):
        flat = x.reshape(*lead, HW)            # free view
        if HW % _LANE:
            # Minimal zero-pad of the last partial lane row only (rare case).
            flat = jnp.pad(flat, [(0, 0)] * len(lead) + [(0, S * _LANE - HW)])
        return flat.reshape(*lead, S, _LANE)

    flow_r = _to_lanes(flow, (N, C))
    pred_r = _to_lanes(flow_pred, (N, C))

    def flow_idx(n, p, w):
        return (n, 0, jnp.minimum(p * WT + w, max_blk), 0)

    in_spec = pl.BlockSpec((1, C, TS, _LANE), flow_idx)
    out_spec = pl.BlockSpec((1, 1, 1, _LANE), lambda n, p, w: (n, p, 0, 0))
    out_shape = jax.ShapeDtypeStruct((N, P, 1, _LANE), jnp.float32)

    compiler_params = pltpu.CompilerParams(
        dimension_semantics=("parallel", "parallel", "arbitrary"),
        vmem_limit_bytes=int(vmem_limit),
    )

    in_bytes = N * S * _LANE * (2 * C * flow_item + mask_item)
    out_bytes = N * P * _LANE * 4 * n_acc
    cost = pl.CostEstimate(
        flops=int(N * S * _LANE * (3 * C + 3)),
        transcendentals=int(N * S * _LANE),
        bytes_accessed=int(in_bytes + out_bytes),
    )

    if has_mask:
        mask_r = _to_lanes(mask, (N,))

        def mask_idx(n, p, w):
            return (n, jnp.minimum(p * WT + w, max_blk), 0)

        err_out, msum_out = pl.pallas_call(
            functools.partial(_l2_masked_kernel, valid_rows=S),
            out_shape=(out_shape, out_shape),
            grid_spec=pltpu.PrefetchScalarGridSpec(
                num_scalar_prefetch=0,
                grid=grid,
                in_specs=[in_spec, in_spec,
                          pl.BlockSpec((1, TS, _LANE), mask_idx)],
                out_specs=[out_spec, out_spec],
                scratch_shapes=[pltpu.VMEM((TS, _LANE), jnp.float32),
                                pltpu.VMEM((TS, _LANE), jnp.float32)],
            ),
            compiler_params=compiler_params,
            cost_estimate=cost,
        )(flow_r, pred_r, mask_r)
        return jnp.sum(err_out) / (jnp.sum(msum_out) + 1e-20)

    err_out = pl.pallas_call(
        functools.partial(_l2_unmasked_kernel, valid_rows=S),
        out_shape=out_shape,
        grid_spec=pltpu.PrefetchScalarGridSpec(
            num_scalar_prefetch=0,
            grid=grid,
            in_specs=[in_spec, in_spec],
            out_specs=out_spec,
            scratch_shapes=[pltpu.VMEM((TS, _LANE), jnp.float32)],
        ),
        compiler_params=compiler_params,
        cost_estimate=cost,
    )(flow_r, pred_r)
    # Padded lanes (if any) contribute exactly 0; divide by the true count.
    return jnp.sum(err_out) / jnp.float32(N * HW)


def _reference(flow_pred, flow, mask=None):
    err = jnp.sqrt(jnp.sum((flow - flow_pred) ** 2, axis=1))
    if mask is not None:
        return jnp.sum(err * mask) / (jnp.sum(mask) + 1e-20)
    return jnp.mean(err)


if __name__ == "__main__":
    key = jax.random.PRNGKey(0)

    def _run_case(key, N, C, H, W):
        k1, k2, k3 = jax.random.split(key, 3)
        flow = jax.random.normal(k1, (N, C, H, W), dtype=jnp.float32)
        flow_pred = jax.random.normal(k2, (N, C, H, W), dtype=jnp.float32)
        mask = (jax.random.uniform(k3, (N, H, W)) > 0.5).astype(jnp.float32)

        loss_masked = my_l2_loss(flow_pred, flow, mask)
        loss_mean = my_l2_loss(flow_pred, flow, None)
        jax.block_until_ready(loss_masked)
        jax.block_until_ready(loss_mean)

        ref_masked = _reference(flow_pred, flow, mask)
        ref_mean = _reference(flow_pred, flow, None)
        assert jnp.allclose(loss_masked, ref_masked, rtol=1e-5, atol=1e-5), (
            (N, C, H, W), loss_masked, ref_masked)
        assert jnp.allclose(loss_mean, ref_mean, rtol=1e-5, atol=1e-5), (
            (N, C, H, W), loss_mean, ref_mean)

    k_a, k_b = jax.random.split(key)
    # Small shape from the spec: batch=2, flow channels=2, spatial 16x16.
    _run_case(k_a, 2, 2, 16, 16)
    # Slightly larger spatial: exercises the P=2 spatial split, partial last
    # block and in-kernel tail masking.
    _run_case(k_b, 2, 2, 48, 48)

    print("KERNEL_OK")
</pallas_src>

<mosaic_0001>
module attributes {stable_mosaic.version = 11 : i64} {
  func.func @_l2_masked_kernel(%arg0: i32, %arg1: i32, %arg2: i32, %arg3: memref<1x2x2x128xf32, #tpu.memory_space<vmem>>, %arg4: memref<1x2x2x128xf32, #tpu.memory_space<vmem>>, %arg5: memref<1x2x128xf32, #tpu.memory_space<vmem>>, %arg6: memref<1x1x1x128xf32, #tpu.memory_space<vmem>>, %arg7: memref<1x1x1x128xf32, #tpu.memory_space<vmem>>, %arg8: memref<2x128xf32, #tpu.memory_space<vmem>>, %arg9: memref<2x128xf32, #tpu.memory_space<vmem>>) attributes {dimension_semantics = [#tpu.dimension_semantics<parallel>, #tpu.dimension_semantics<parallel>, #tpu.dimension_semantics<arbitrary>], iteration_bounds = array<i64: 2, 1, 1>, scalar_prefetch = 0 : i64, scratch_operands = 2 : i64, tpu.core_type = #tpu.core_type<tc>, window_params = [{transform_indices = @transform_0, window_bounds = array<i64: 1, 2, 2, 128>}, {transform_indices = @transform_1, window_bounds = array<i64: 1, 2, 2, 128>}, {transform_indices = @transform_2, window_bounds = array<i64: 1, 2, 128>}, {transform_indices = @transform_3, window_bounds = array<i64: 1, 1, 1, 128>}, {transform_indices = @transform_4, window_bounds = array<i64: 1, 1, 1, 128>}]} {
    %c0_i32 = arith.constant 0 : i32
    %0 = arith.cmpi eq, %arg2, %c0_i32 : i32
    %1 = arith.extui %0 : i1 to i32
    %c0_i32_0 = arith.constant 0 : i32
    %2 = arith.cmpi ne, %1, %c0_i32_0 : i32
    scf.if %2 {
      %cst_30 = arith.constant 0.000000e+00 : f32
      %41 = vector.broadcast %cst_30 : f32 to vector<2x128xf32>
      %c0_31 = arith.constant 0 : index
      %c0_32 = arith.constant 0 : index
      %42 = vector.load %arg8[%c0_31, %c0_32] : memref<2x128xf32, #tpu.memory_space<vmem>>, vector<2x128xf32>
      tpu.vector_store %arg8[%c0_31, %c0_32], %41 {strides = array<i32>} : memref<2x128xf32, #tpu.memory_space<vmem>>, vector<2x128xf32>,
      %cst_33 = arith.constant 0.000000e+00 : f32
      %43 = vector.broadcast %cst_33 : f32 to vector<2x128xf32>
      %c0_34 = arith.constant 0 : index
      %c0_35 = arith.constant 0 : index
      %44 = vector.load %arg9[%c0_34, %c0_35] : memref<2x128xf32, #tpu.memory_space<vmem>>, vector<2x128xf32>
      tpu.vector_store %arg9[%c0_34, %c0_35], %43 {strides = array<i32>} : memref<2x128xf32, #tpu.memory_space<vmem>>, vector<2x128xf32>,
    } else {
    }
    %c0 = arith.constant 0 : index
    %c0_1 = arith.constant 0 : index
    %c0_2 = arith.constant 0 : index
    %c0_3 = arith.constant 0 : index
    %3 = vector.load %arg3[%c0, %c0_1, %c0_2, %c0_3] : memref<1x2x2x128xf32, #tpu.memory_space<vmem>>, vector<1x1x2x128xf32>
    %4 = vector.shape_cast %3 : vector<1x1x2x128xf32> to vector<2x128xf32>
    %c0_4 = arith.constant 0 : index
    %c0_5 = arith.constant 0 : index
    %c0_6 = arith.constant 0 : index
    %c0_7 = arith.constant 0 : index
    %5 = vector.load %arg4[%c0_4, %c0_5, %c0_6, %c0_7] : memref<1x2x2x128xf32, #tpu.memory_space<vmem>>, vector<1x1x2x128xf32>
    %6 = vector.shape_cast %5 : vector<1x1x2x128xf32> to vector<2x128xf32>
    %7 = arith.subf %4, %6 : vector<2x128xf32>
    %8 = arith.mulf %7, %7 : vector<2x128xf32>
    %c0_8 = arith.constant 0 : index
    %c1 = arith.constant 1 : index
    %c0_9 = arith.constant 0 : index
    %c0_10 = arith.constant 0 : index
    %9 = vector.load %arg3[%c0_8, %c1, %c0_9, %c0_10] : memref<1x2x2x128xf32, #tpu.memory_space<vmem>>, vector<1x1x2x128xf32>
    %10 = vector.shape_cast %9 : vector<1x1x2x128xf32> to vector<2x128xf32>
    %c0_11 = arith.constant 0 : index
    %c1_12 = arith.constant 1 : index
    %c0_13 = arith.constant 0 : index
    %c0_14 = arith.constant 0 : index
    %11 = vector.load %arg4[%c0_11, %c1_12, %c0_13, %c0_14] : memref<1x2x2x128xf32, #tpu.memory_space<vmem>>, vector<1x1x2x128xf32>
    %12 = vector.shape_cast %11 : vector<1x1x2x128xf32> to vector<2x128xf32>
    %13 = arith.subf %10, %12 : vector<2x128xf32>
    %14 = arith.mulf %13, %13 : vector<2x128xf32>
    %15 = arith.addf %8, %14 : vector<2x128xf32>
    %16 = math.sqrt %15 : vector<2x128xf32>
    %c0_15 = arith.constant 0 : index
    %c0_16 = arith.constant 0 : index
    %c0_17 = arith.constant 0 : index
    %17 = vector.load %arg5[%c0_15, %c0_16, %c0_17] : memref<1x2x128xf32, #tpu.memory_space<vmem>>, vector<1x2x128xf32>
    %18 = vector.shape_cast %17 : vector<1x2x128xf32> to vector<2x128xf32>
    %c1_i32 = arith.constant 1 : i32
    %19 = arith.muli %arg1, %c1_i32 : i32
    %20 = arith.addi %19, %arg2 : i32
    %c2_i32 = arith.constant 2 : i32
    %21 = arith.muli %20, %c2_i32 : i32
    %22 = tpu.iota {dimensions = array<i32: 0>} : vector<2x128xi32>
    %23 = vector.broadcast %21 : i32 to vector<2x128xi32>
    %24 = arith.addi %22, %23 : vector<2x128xi32>
    %c2_i32_18 = arith.constant 2 : i32
    %25 = vector.broadcast %c2_i32_18 : i32 to vector<2x128xi32>
    %26 = arith.cmpi slt, %24, %25 : vector<2x128xi32>
    %c0_19 = arith.constant 0 : index
    %c0_20 = arith.constant 0 : index
    %27 = vector.load %arg8[%c0_19, %c0_20] : memref<2x128xf32, #tpu.memory_space<vmem>>, vector<2x128xf32>
    %28 = arith.mulf %16, %18 : vector<2x128xf32>
    %cst = arith.constant 0.000000e+00 : f32
    %29 = vector.broadcast %cst : f32 to vector<2x128xf32>
    %30 = arith.select %26, %28, %29 : vector<2x128xi1>, vector<2x128xf32>
    %31 = arith.addf %27, %30 : vector<2x128xf32>
    %c0_21 = arith.constant 0 : index
    %c0_22 = arith.constant 0 : index
    %32 = vector.load %arg8[%c0_21, %c0_22] : memref<2x128xf32, #tpu.memory_space<vmem>>, vector<2x128xf32>
    tpu.vector_store %arg8[%c0_21, %c0_22], %31 {strides = array<i32>} : memref<2x128xf32, #tpu.memory_space<vmem>>, vector<2x128xf32>,
    %c0_23 = arith.constant 0 : index
    %c0_24 = arith.constant 0 : index
    %33 = vector.load %arg9[%c0_23, %c0_24] : memref<2x128xf32, #tpu.memory_space<vmem>>, vector<2x128xf32>
    %cst_25 = arith.constant 0.000000e+00 : f32
    %34 = vector.broadcast %cst_25 : f32 to vector<2x128xf32>
    %35 = arith.select %26, %18, %34 : vector<2x128xi1>, vector<2x128xf32>
    %36 = arith.addf %33, %35 : vector<2x128xf32>
    %c0_26 = arith.constant 0 : index
    %c0_27 = arith.constant 0 : index
    %37 = vector.load %arg9[%c0_26, %c0_27] : memref<2x128xf32, #tpu.memory_space<vmem>>, vector<2x128xf32>
    tpu.vector_store %arg9[%c0_26, %c0_27], %36 {strides = array<i32>} : memref<2x128xf32, #tpu.memory_space<vmem>>, vector<2x128xf32>,
    %c0_i32_28 = arith.constant 0 : i32
    %38 = arith.cmpi eq, %arg2, %c0_i32_28 : i32
    %39 = arith.extui %38 : i1 to i32
    %c0_i32_29 = arith.constant 0 : i32
    %40 = arith.cmpi ne, %39, %c0_i32_29 : i32
    scf.if %40 {
      %c0_30 = arith.constant 0 : index
      %c0_31 = arith.constant 0 : index
      %41 = vector.load %arg8[%c0_30, %c0_31] : memref<2x128xf32, #tpu.memory_space<vmem>>, vector<2x128xf32>
      %cst_32 = arith.constant dense<0.000000e+00> : vector<128xf32>
      %42 = vector.multi_reduction <add>, %41, %cst_32 [0] : vector<2x128xf32> to vector<128xf32>
      %43 = vector.shape_cast %42 : vector<128xf32> to vector<1x128xf32>
      %44 = vector.shape_cast %43 : vector<1x128xf32> to vector<1x1x1x128xf32>
      %c0_33 = arith.constant 0 : index
      %c0_34 = arith.constant 0 : index
      %c0_35 = arith.constant 0 : index
      %c0_36 = arith.constant 0 : index
      %45 = vector.load %arg6[%c0_33, %c0_34, %c0_35, %c0_36] : memref<1x1x1x128xf32, #tpu.memory_space<vmem>>, vector<1x1x1x128xf32>
      tpu.vector_store %arg6[%c0_33, %c0_34, %c0_35, %c0_36], %44 {strides = array<i32>} : memref<1x1x1x128xf32, #tpu.memory_space<vmem>>, vector<1x1x1x128xf32>,
      %c0_37 = arith.constant 0 : index
      %c0_38 = arith.constant 0 : index
      %46 = vector.load %arg9[%c0_37, %c0_38] : memref<2x128xf32, #tpu.memory_space<vmem>>, vector<2x128xf32>
      %cst_39 = arith.constant dense<0.000000e+00> : vector<128xf32>
      %47 = vector.multi_reduction <add>, %46, %cst_39 [0] : vector<2x128xf32> to vector<128xf32>
      %48 = vector.shape_cast %47 : vector<128xf32> to vector<1x128xf32>
      %49 = vector.shape_cast %48 : vector<1x128xf32> to vector<1x1x1x128xf32>
      %c0_40 = arith.constant 0 : index
      %c0_41 = arith.constant 0 : index
      %c0_42 = arith.constant 0 : index
      %c0_43 = arith.constant 0 : index
      %50 = vector.load %arg7[%c0_40, %c0_41, %c0_42, %c0_43] : memref<1x1x1x128xf32, #tpu.memory_space<vmem>>, vector<1x1x1x128xf32>
      tpu.vector_store %arg7[%c0_40, %c0_41, %c0_42, %c0_43], %49 {strides = array<i32>} : memref<1x1x1x128xf32, #tpu.memory_space<vmem>>, vector<1x1x1x128xf32>,
    } else {
    }
    return
  }
  func.func @transform_0(%arg0: i32, %arg1: i32, %arg2: i32) -> (i32, i32, i32, i32) {
    %c1_i32 = arith.constant 1 : i32
    %0 = arith.muli %arg1, %c1_i32 : i32
    %1 = arith.addi %0, %arg2 : i32
    %c0_i32 = arith.constant 0 : i32
    %2 = arith.minsi %1, %c0_i32 : i32
    %c0_i32_0 = arith.constant 0 : i32
    %c0_i32_1 = arith.constant 0 : i32
    %c0_i32_2 = arith.constant 0 : i32
    return %arg0, %c0_i32_0, %2, %c0_i32_1 : i32, i32, i32, i32
  }
  func.func @transform_1(%arg0: i32, %arg1: i32, %arg2: i32) -> (i32, i32, i32, i32) {
    %c1_i32 = arith.constant 1 : i32
    %0 = arith.muli %arg1, %c1_i32 : i32
    %1 = arith.addi %0, %arg2 : i32
    %c0_i32 = arith.constant 0 : i32
    %2 = arith.minsi %1, %c0_i32 : i32
    %c0_i32_0 = arith.constant 0 : i32
    %c0_i32_1 = arith.constant 0 : i32
    %c0_i32_2 = arith.constant 0 : i32
    return %arg0, %c0_i32_0, %2, %c0_i32_1 : i32, i32, i32, i32
  }
  func.func @transform_2(%arg0: i32, %arg1: i32, %arg2: i32) -> (i32, i32, i32) {
    %c1_i32 = arith.constant 1 : i32
    %0 = arith.muli %arg1, %c1_i32 : i32
    %1 = arith.addi %0, %arg2 : i32
    %c0_i32 = arith.constant 0 : i32
    %2 = arith.minsi %1, %c0_i32 : i32
    %c0_i32_0 = arith.constant 0 : i32
    %c0_i32_1 = arith.constant 0 : i32
    return %arg0, %2, %c0_i32_0 : i32, i32, i32
  }
  func.func @transform_3(%arg0: i32, %arg1: i32, %arg2: i32) -> (i32, i32, i32, i32) {
    %c0_i32 = arith.constant 0 : i32
    %c0_i32_0 = arith.constant 0 : i32
    %c0_i32_1 = arith.constant 0 : i32
    return %arg0, %arg1, %c0_i32, %c0_i32_0 : i32, i32, i32, i32
  }
  func.func @transform_4(%arg0: i32, %arg1: i32, %arg2: i32) -> (i32, i32, i32, i32) {
    %c0_i32 = arith.constant 0 : i32
    %c0_i32_0 = arith.constant 0 : i32
    %c0_i32_1 = arith.constant 0 : i32
    return %arg0, %arg1, %c0_i32, %c0_i32_0 : i32, i32, i32, i32
  }
}

</mosaic_0001>

<llo_original>
// kernel: my_l2_loss.1
$region0: #{my_l2_loss.1}
  #allocation0 [shape = 'u32[]', space=smem, size = 0x4, offset = 0x4, fixed_abs, tag = 'smem constant byte address 0x4 - core index']
  #allocation1 [shape = 'u32[72,128]{1,0:T(1,128)}', space=vmem, size = 0x9000, scoped, tag = 'internal scratch']
  #allocation2 [shape = 'f32[2,128]{1,0:T(2,128)}', space=vmem, size = 0x400, scoped, tag = 'scratch operand']
  #allocation3 [shape = 'f32[2,128]{1,0:T(2,128)}', space=vmem, size = 0x400, scoped, tag = 'scratch operand']
  %s0 = inlined_call_operand.vmem [shape: f32[2,2,2,128], index: 0, kind: input, shape index: {}]
  %s1 = inlined_call_operand.vmem [shape: f32[2,2,2,128], index: 1, kind: input, shape index: {}]
  %s2 = inlined_call_operand.vmem [shape: f32[2,2,128], index: 2, kind: input, shape index: {}]
  %s3 = inlined_call_operand.vmem [shape: f32[2,1,1,128], index: 3, kind: output, shape index: {0}]
  %s4 = inlined_call_operand.vmem [shape: f32[2,1,1,128], index: 4, kind: output, shape index: {1}]
  %5 = xla_tuple %s3, %s4
  %s6 = sld [smem:[#allocation0]]
  $region61: #{my_l2_loss.1} parent=0
    _
  %s8 = ssub.s32 1, %s6
  %s9 = scalar_select 0, %s8, %s6
  loop: start=0, step=1, limit=4
  $region2: #{my_l2_loss.1} parent=0 // loop_pre_header
    _
  $region3: #{my_l2_loss.1} parent=0 // loop_header
    %s11 = sphi 0, %s15
    %p12 = scmp.ge.s32.totalorder %s11, 4
    %s18 = sphi 0, %s37
    %s19 = sphi 0, %s33
    %s20 = sphi 0, %s29
    %s21 = sphi 0, %s18
    %s22 = sphi 0, %s19
    %s23 = sphi 0, %s20
    %s24 = sphi 0, %s21
    %s25 = sphi 0, %s22
    %s26 = sphi 0, %s23
    %s48 = sphi 0, %s50
    %s51 = sphi 0, %s48
    %s52 = sphi 0, %s51
    %s68 = sphi 0, %s52
    %s82 = sphi 0, %s84
    %s85 = sphi 0, %s82
    %s86 = sphi 0, %s85
    %s102 = sphi 0, %s86
    %s116 = sphi 0, %s118
    %s119 = sphi 0, %s116
    %s120 = sphi 0, %s119
    %s136 = sphi 0, %s120
    %s144 = sphi 0, %s146
    %s147 = sphi 0, %s144
    %s148 = sphi 0, %s147
    %s164 = sphi 0, %s148
    %s172 = sphi 0, %s174
    %s175 = sphi 0, %s172
    %s176 = sphi 0, %s175
    %s192 = sphi 0, %s176
  $region4: #{my_l2_loss.1} parent=0 // loop_header_branch
    %14 = sbr.rel (%p12) target = $region8
  $region5: #{my_l2_loss.1} parent=0 // loop_body
    %s16 = ssub.s32 %s11, 1
    %s17 = ssub.s32 %s11, 2
    %s27 = sadd.s32 1, %s20
    %p28 = scmp.ge.s32.totalorder %s27, 1
    %s29 = scalar_select %p28, 0, %s27
    %s30 = sadd.s32 1, %s19
    %s31 = scalar_select %p28, %s30, %s19
    %p32 = scmp.ge.s32.totalorder %s31, 1
    %s33 = scalar_select %p32, 0, %s31
    %s34 = sadd.s32 1, %s18
    %s35 = scalar_select %p32, %s34, %s18
    %p36 = scmp.ge.s32.totalorder %s35, 2
    %s37 = scalar_select %p36, 0, %s35
    %s38 = sadd.s32 %s19, %s20
    %p39 = scmp.lt.s32.totalorder %s38, 0
    %s40 = scalar_select %p39, %s38, 0
    %s41 = sadd.s32 %s33, %s29
    %p42 = scmp.lt.s32.totalorder %s41, 0
    %s43 = scalar_select %p42, %s41, 0
    %s44 = ssub.s32 %s18, %s37
    %s45 = ssub.s32 %s40, %s43
    %s46 = sor.u32 %s44, %s45
    %p47 = scmp.eq.s32.totalorder %s46, 0
    %s49 = sadd.s32 %s48, 1
    %s50 = scalar_select %p47, %s48, %s49
    %p53 = pneg %p47
    %p54 = scmp.eq.s32.totalorder %s11, 1
    %p55 = por %p53, %p54
    %p56 = scmp.ne.s32.totalorder %s48, %s51
    %p57 = scmp.eq.s32.totalorder %s11, 0
    %p58 = por %p56, %p57
    %p59 = scmp.ne.s32.totalorder %s48, %s51
    %p60 = scmp.eq.s32.totalorder %s16, 1
    %p61 = por %p59, %p60
    %p62 = scmp.ne.s32.totalorder %s51, %s52
    %p63 = scmp.eq.s32.totalorder %s16, 0
    %p64 = por %p62, %p63
    %p65 = scmp.ne.s32.totalorder %s51, %s52
    %p66 = scmp.eq.s32.totalorder %s17, 1
    %p67 = por %p65, %p66
    %p69 = scmp.ne.s32.totalorder %s52, %s68
    %p70 = scmp.eq.s32.totalorder %s17, 0
    %p71 = por %p69, %p70
    %s72 = sadd.s32 %s19, %s20
    %p73 = scmp.lt.s32.totalorder %s72, 0
    %s74 = scalar_select %p73, %s72, 0
    %s75 = sadd.s32 %s33, %s29
    %p76 = scmp.lt.s32.totalorder %s75, 0
    %s77 = scalar_select %p76, %s75, 0
    %s78 = ssub.s32 %s18, %s37
    %s79 = ssub.s32 %s74, %s77
    %s80 = sor.u32 %s78, %s79
    %p81 = scmp.eq.s32.totalorder %s80, 0
    %s83 = sadd.s32 %s82, 1
    %s84 = scalar_select %p81, %s82, %s83
    %p87 = pneg %p81
    %p88 = scmp.eq.s32.totalorder %s11, 1
    %p89 = por %p87, %p88
    %p90 = scmp.ne.s32.totalorder %s82, %s85
    %p91 = scmp.eq.s32.totalorder %s11, 0
    %p92 = por %p90, %p91
    %p93 = scmp.ne.s32.totalorder %s82, %s85
    %p94 = scmp.eq.s32.totalorder %s16, 1
    %p95 = por %p93, %p94
    %p96 = scmp.ne.s32.totalorder %s85, %s86
    %p97 = scmp.eq.s32.totalorder %s16, 0
    %p98 = por %p96, %p97
    %p99 = scmp.ne.s32.totalorder %s85, %s86
    %p100 = scmp.eq.s32.totalorder %s17, 1
    %p101 = por %p99, %p100
    %p103 = scmp.ne.s32.totalorder %s86, %s102
    %p104 = scmp.eq.s32.totalorder %s17, 0
    %p105 = por %p103, %p104
    %s106 = sadd.s32 %s19, %s20
    %p107 = scmp.lt.s32.totalorder %s106, 0
    %s108 = scalar_select %p107, %s106, 0
    %s109 = sadd.s32 %s33, %s29
    %p110 = scmp.lt.s32.totalorder %s109, 0
    %s111 = scalar_select %p110, %s109, 0
    %s112 = ssub.s32 %s18, %s37
    %s113 = ssub.s32 %s108, %s111
    %s114 = sor.u32 %s112, %s113
    %p115 = scmp.eq.s32.totalorder %s114, 0
    %s117 = sadd.s32 %s116, 1
    %s118 = scalar_select %p115, %s116, %s117
    %p121 = pneg %p115
    %p122 = scmp.eq.s32.totalorder %s11, 1
    %p123 = por %p121, %p122
    %p124 = scmp.ne.s32.totalorder %s116, %s119
    %p125 = scmp.eq.s32.totalorder %s11, 0
    %p126 = por %p124, %p125
    %p127 = scmp.ne.s32.totalorder %s116, %s119
    %p128 = scmp.eq.s32.totalorder %s16, 1
    %p129 = por %p127, %p128
    %p130 = scmp.ne.s32.totalorder %s119, %s120
    %p131 = scmp.eq.s32.totalorder %s16, 0
    %p132 = por %p130, %p131
    %p133 = scmp.ne.s32.totalorder %s119, %s120
    %p134 = scmp.eq.s32.totalorder %s17, 1
    %p135 = por %p133, %p134
    %p137 = scmp.ne.s32.totalorder %s120, %s136
    %p138 = scmp.eq.s32.totalorder %s17, 0
    %p139 = por %p137, %p138
    %s140 = ssub.s32 %s18, %s37
    %s141 = ssub.s32 %s19, %s33
    %s142 = sor.u32 %s140, %s141
    %p143 = scmp.eq.s32.totalorder %s142, 0
    %s145 = sadd.s32 %s144, 1
    %s146 = scalar_select %p143, %s144, %s145
    %p149 = pneg %p143
    %p150 = scmp.eq.s32.totalorder %s11, 1
    %p151 = por %p149, %p150
    %p152 = scmp.ne.s32.totalorder %s144, %s147
    %p153 = scmp.eq.s32.totalorder %s11, 0
    %p154 = por %p152, %p153
    %p155 = scmp.ne.s32.totalorder %s144, %s147
    %p156 = scmp.eq.s32.totalorder %s16, 1
    %p157 = por %p155, %p156
    %p158 = scmp.ne.s32.totalorder %s147, %s148
    %p159 = scmp.eq.s32.totalorder %s16, 0
    %p160 = por %p158, %p159
    %p161 = scmp.ne.s32.totalorder %s147, %s148
    %p162 = scmp.eq.s32.totalorder %s17, 1
    %p163 = por %p161, %p162
    %p165 = scmp.ne.s32.totalorder %s148, %s164
    %p166 = scmp.eq.s32.totalorder %s17, 0
    %p167 = por %p165, %p166
    %s168 = ssub.s32 %s18, %s37
    %s169 = ssub.s32 %s19, %s33
    %s170 = sor.u32 %s168, %s169
    %p171 = scmp.eq.s32.totalorder %s170, 0
    %s173 = sadd.s32 %s172, 1
    %s174 = scalar_select %p171, %s172, %s173
    %p177 = pneg %p171
    %p178 = scmp.eq.s32.totalorder %s11, 1
    %p179 = por %p177, %p178
    %p180 = scmp.ne.s32.totalorder %s172, %s175
    %p181 = scmp.eq.s32.totalorder %s11, 0
    %p182 = por %p180, %p181
    %p183 = scmp.ne.s32.totalorder %s172, %s175
    %p184 = scmp.eq.s32.totalorder %s16, 1
    %p185 = por %p183, %p184
    %p186 = scmp.ne.s32.totalorder %s175, %s176
    %p187 = scmp.eq.s32.totalorder %s16, 0
    %p188 = por %p186, %p187
    %p189 = scmp.ne.s32.totalorder %s175, %s176
    %p190 = scmp.eq.s32.totalorder %s17, 1
    %p191 = por %p189, %p190
    %p193 = scmp.ne.s32.totalorder %s176, %s192
    %p194 = scmp.eq.s32.totalorder %s17, 0
    %p195 = por %p193, %p194
    %p196 = scmp.le.s32.totalorder 1, %s11
    %p197 = scmp.lt.s32.totalorder %s11, 3
    %p198 = pnand %p196, %p197
    %p199 = pneg %p198
    // Predicated region
    $region9: #{my_l2_loss.1} parent=5 // pred_check
      _
    $region10: #{my_l2_loss.1} parent=5 // pred_check_branch
      %201 = sbr.rel (%p198) target = $region12
    $region11: #{my_l2_loss.1} parent=5 // pred_region
      %s202 = ssub.s32 %s11, 1
    $region12: #{my_l2_loss.1} parent=5 // pred_fallthru
      _
    %p203 = scmp.lt.s32.totalorder %s11, 2
    // Predicated region
    $region13: #{my_l2_loss.1} parent=5 // pred_check
      %p204 = pneg %p203
    $region14: #{my_l2_loss.1} parent=5 // pred_check_branch
      %206 = sbr.rel (%p204) target = $region16
    $region15: #{my_l2_loss.1} parent=5 // pred_region
      // Predicated region
      $region17: #{my_l2_loss.1} parent=15 // pred_check
        %p207 = pneg %p58
      $region18: #{my_l2_loss.1} parent=15 // pred_check_branch
        %209 = sbr.rel (%p207) target = $region20
      $region19: #{my_l2_loss.1} parent=15 // pred_region
        %s210 = sadd.s32 %s19, %s20
        %p211 = scmp.lt.s32.totalorder %s210, 0
        %s212 = scalar_select %p211, %s210, 0
        %p213 = scmp.lt.s32.totalorder %s18, 1
        %s214 = scalar_select %p213, %s18, 1
        %p215 = scmp.lt.s32.totalorder %s212, 0
        %s216 = scalar_select %p215, %s212, 0
        %s217 = smul.addr %s214, 2
        %s218 = sadd.s32 %s216, %s217
        %s219 = smul.addr %s218, 2
        %s220 = scalar_lea.vmem %s0, %s219
        %s221 = sadd.s32 %s19, %s20
        %p222 = scmp.lt.s32.totalorder %s221, 0
        %s223 = scalar_select %p222, %s221, 0
      $region20: #{my_l2_loss.1} parent=15 // pred_fallthru
        _
      // Predicated region
      $region21: #{my_l2_loss.1} parent=15 // pred_check
        %p224 = pneg %p92
      $region22: #{my_l2_loss.1} parent=15 // pred_check_branch
        %226 = sbr.rel (%p224) target = $region24
      $region23: #{my_l2_loss.1} parent=15 // pred_region
        %s227 = sadd.s32 %s19, %s20
        %p228 = scmp.lt.s32.totalorder %s227, 0
        %s229 = scalar_select %p228, %s227, 0
        %p230 = scmp.lt.s32.totalorder %s18, 1
        %s231 = scalar_select %p230, %s18, 1
        %p232 = scmp.lt.s32.totalorder %s229, 0
        %s233 = scalar_select %p232, %s229, 0
        %s234 = smul.addr %s231, 2
        %s235 = sadd.s32 %s233, %s234
        %s236 = smul.addr %s235, 2
        %s237 = scalar_lea.vmem %s1, %s236
        %s238 = sadd.s32 %s19, %s20
        %p239 = scmp.lt.s32.totalorder %s238, 0
        %s240 = scalar_select %p239, %s238, 0
      $region24: #{my_l2_loss.1} parent=15 // pred_fallthru
        _
      // Predicated region
      $region25: #{my_l2_loss.1} parent=15 // pred_check
        %p241 = pneg %p126
      $region26: #{my_l2_loss.1} parent=15 // pred_check_branch
        %243 = sbr.rel (%p241) target = $region28
      $region27: #{my_l2_loss.1} parent=15 // pred_region
        %s244 = sadd.s32 %s19, %s20
        %p245 = scmp.lt.s32.totalorder %s244, 0
        %s246 = scalar_select %p245, %s244, 0
        %p247 = scmp.lt.s32.totalorder %s18, 1
        %s248 = scalar_select %p247, %s18, 1
        %p249 = scmp.lt.s32.totalorder %s246, 0
        %s250 = scalar_select %p249, %s246, 0
        %s251 = sadd.s32 %s250, %s248
        %s252 = smul.addr %s251, 2
        %s253 = scalar_lea.vmem %s2, %s252
        %s254 = sadd.s32 %s19, %s20
        %p255 = scmp.lt.s32.totalorder %s254, 0
        %s256 = scalar_select %p255, %s254, 0
      $region28: #{my_l2_loss.1} parent=15 // pred_fallthru
        _
    $region16: #{my_l2_loss.1} parent=5 // pred_fallthru
      _
    %p257 = scmp.le.s32.totalorder 1, %s11
    %p258 = scmp.lt.s32.totalorder %s11, 3
    %p259 = pnand %p257, %p258
    %p260 = pneg %p259
    // Predicated region
    $region29: #{my_l2_loss.1} parent=5 // pred_check
      _
    $region30: #{my_l2_loss.1} parent=5 // pred_check_branch
      %262 = sbr.rel (%p259) target = $region32
    $region31: #{my_l2_loss.1} parent=5 // pred_region
      %s263 = ssub.s32 %s11, 1
      %s264 = sadd.s32 %s22, %s23
      %p265 = scmp.lt.s32.totalorder %s264, 0
      %s266 = scalar_select %p265, %s264, 0
      %p267 = scmp.lt.s32.totalorder %s21, 1
      %s268 = scalar_select %p267, %s21, 1
      %p269 = scmp.lt.s32.totalorder %s266, 0
      %s270 = scalar_select %p269, %s266, 0
      %s271 = smul.addr %s268, 2
      %s272 = sadd.s32 %s270, %s271
      %s273 = smul.addr %s272, 2
      %s274 = scalar_lea.vmem %s0, %s273
      %p275 = pneg %p64
      %p276 = pneg %p61
      %s277 = sadd.s32 %s22, %s23
      %p278 = scmp.lt.s32.totalorder %s277, 0
      %s279 = scalar_select %p278, %s277, 0
      %p280 = scmp.lt.s32.totalorder %s21, 1
      %s281 = scalar_select %p280, %s21, 1
      %p282 = scmp.lt.s32.totalorder %s279, 0
      %s283 = scalar_select %p282, %s279, 0
      %s284 = smul.addr %s281, 2
      %s285 = sadd.s32 %s283, %s284
      %s286 = smul.addr %s285, 2
      %s287 = scalar_lea.vmem %s1, %s286
      %p288 = pneg %p98
      %p289 = pneg %p95
      %s290 = sadd.s32 %s22, %s23
      %p291 = scmp.lt.s32.totalorder %s290, 0
      %s292 = scalar_select %p291, %s290, 0
      %p293 = scmp.lt.s32.totalorder %s21, 1
      %s294 = scalar_select %p293, %s21, 1
      %p295 = scmp.lt.s32.totalorder %s292, 0
      %s296 = scalar_select %p295, %s292, 0
      %s297 = sadd.s32 %s296, %s294
      %s298 = smul.addr %s297, 2
      %s299 = scalar_lea.vmem %s2, %s298
      %p300 = pneg %p132
      %p301 = pneg %p129
      %p302 = pneg %p160
      %p303 = pneg %p157
      %p304 = scmp.lt.s32.totalorder %s21, 1
      %s305 = scalar_select %p304, %s21, 1
      %p306 = scmp.lt.s32.totalorder %s22, 0
      %s307 = scalar_select %p306, %s22, 0
      %s308 = sadd.s32 %s307, %s305
      %s309 = scalar_lea.vmem %s3, %s308
      %p310 = pneg %p188
      %p311 = pneg %p185
      %p312 = scmp.lt.s32.totalorder %s21, 1
      %s313 = scalar_select %p312, %s21, 1
      %p314 = scmp.lt.s32.totalorder %s22, 0
      %s315 = scalar_select %p314, %s22, 0
      %s316 = sadd.s32 %s315, %s313
      %s317 = scalar_lea.vmem %s4, %s316
      %s318 = sadd.s32 %s22, %s23
      %p319 = scmp.lt.s32.totalorder %s318, 0
      %s320 = scalar_select %p319, %s318, 0
      %p321 = scmp.lt.s32.totalorder %s21, 1
      %s322 = scalar_select %p321, %s21, 1
      %p323 = scmp.lt.s32.totalorder %s320, 0
      %s324 = scalar_select %p323, %s320, 0
      %s325 = smul.addr %s322, 2
      %s326 = sadd.s32 %s324, %s325
      %s327 = smul.addr %s326, 2
      %s328 = scalar_lea.vmem %s0, %s327
      %s329 = sadd.s32 %s22, %s23
      %p330 = scmp.lt.s32.totalorder %s329, 0
      %s331 = scalar_select %p330, %s329, 0
      %s332 = sadd.s32 %s22, %s23
      %p333 = scmp.lt.s32.totalorder %s332, 0
      %s334 = scalar_select %p333, %s332, 0
      %p335 = scmp.lt.s32.totalorder %s21, 1
      %s336 = scalar_select %p335, %s21, 1
      %p337 = scmp.lt.s32.totalorder %s334, 0
      %s338 = scalar_select %p337, %s334, 0
      %s339 = smul.addr %s336, 2
      %s340 = sadd.s32 %s338, %s339
      %s341 = smul.addr %s340, 2
      %s342 = scalar_lea.vmem %s1, %s341
      %s343 = sadd.s32 %s22, %s23
      %p344 = scmp.lt.s32.totalorder %s343, 0
      %s345 = scalar_select %p344, %s343, 0
      %s346 = sadd.s32 %s22, %s23
      %p347 = scmp.lt.s32.totalorder %s346, 0
      %s348 = scalar_select %p347, %s346, 0
      %p349 = scmp.lt.s32.totalorder %s21, 1
      %s350 = scalar_select %p349, %s21, 1
      %p351 = scmp.lt.s32.totalorder %s348, 0
      %s352 = scalar_select %p351, %s348, 0
      %s353 = sadd.s32 %s352, %s350
      %s354 = smul.addr %s353, 2
      %s355 = scalar_lea.vmem %s2, %s354
      %s356 = sadd.s32 %s22, %s23
      %p357 = scmp.lt.s32.totalorder %s356, 0
      %s358 = scalar_select %p357, %s356, 0
      %p359 = scmp.lt.s32.totalorder %s21, 1
      %s360 = scalar_select %p359, %s21, 1
      %p361 = scmp.lt.s32.totalorder %s22, 0
      %s362 = scalar_select %p361, %s22, 0
      %s363 = sadd.s32 %s362, %s360
      %s364 = scalar_lea.vmem %s3, %s363
      %p365 = scmp.lt.s32.totalorder %s21, 1
      %s366 = scalar_select %p365, %s21, 1
      %p367 = scmp.lt.s32.totalorder %s22, 0
      %s368 = scalar_select %p367, %s22, 0
      %s369 = sadd.s32 %s368, %s366
      %s370 = scalar_lea.vmem %s4, %s369
      %p371 = scmp.eq.s32.totalorder %s23, 0
      // Predicated region
      $region33: #{my_l2_loss.1} parent=31 // pred_check
        %p372 = pneg %p371
      $region34: #{my_l2_loss.1} parent=31 // pred_check_branch
        %374 = sbr.rel (%p372) target = $region36
      $region35: #{my_l2_loss.1} parent=31 // pred_region
        %375 = vst [vmem:[#allocation2] sm:$0x3] 0.0
        %376 = vst [vmem:[#allocation3] sm:$0x3] 0.0
      $region36: #{my_l2_loss.1} parent=31 // pred_fallthru
        _
      %v377 = vld [vmem:[%s328] sm:$0x3]
      %v378 = vld [vmem:[%s342] sm:$0x3]
      %v379 = vsub.f32 %v377, %v378
      %v380 = vmul.f32 %v379, %v379
      %s381 = scalar_lea.vmem %s328, 2
      %v382 = vld [vmem:[%s381] sm:$0x3]
      %s383 = scalar_lea.vmem %s342, 2
      %v384 = vld [vmem:[%s383] sm:$0x3]
      %v385 = vsub.f32 %v382, %v384
      %v386 = vmul.f32 %v385, %v385
      %v387 = vadd.f32 %v380, %v386
      %v388 = vrsqrt.pop %v387
      %v389 = vmul.f32 %v388, %v387
      %v390 = vmul.f32 %v389, %v388
      %v391 = vmul.f32 0.5, %v390
      %v392 = vsub.f32 1.5, %v391
      %v393 = vmul.f32 %v388, %v392
      %v394 = vmul.f32 %v387, %v393
      %vm395 = vcmp.eq.f32.partialorder %v387, inf
      %v396 = vsel %vm395, %v387, %v394
      %vm397 = vcmp.eq.f32.partialorder %v387, 0.0
      %v398 = vand.u32 %v387, 2147483648
      %v399 = vsel %vm397, %v398, %v396
      %v400 = vld [vmem:[%s355] sm:$0x3]
      %s401 = sadd.s32 %s22, %s23
      %s402 = smul.u32 %s401, 2
      %v403 = vlaneseq
      %v404 = vshrl.u32 %v403, 7
      %v405 = vstv %s402
      %v406 = vadd.s32 %v404, %v405
      %vm407 = vcmp.lt.s32.totalorder %v406, 2
      %v408 = vld [vmem:[#allocation2] sm:$0x3]
      %v409 = vmul.f32 %v399, %v400
      %v410 = vsel %vm407, %v409, 0.0
      %v411 = vadd.f32 %v408, %v410
      %412 = vst [vmem:[#allocation2] sm:$0x3] %v411
      %v413 = vld [vmem:[#allocation3] sm:$0x3]
      %v414 = vsel %vm407, %v400, 0.0
      %v415 = vadd.f32 %v413, %v414
      %416 = vst [vmem:[#allocation3] sm:$0x3] %v415
      // Predicated region
      $region37: #{my_l2_loss.1} parent=31 // pred_check
        %p417 = pneg %p371
      $region38: #{my_l2_loss.1} parent=31 // pred_check_branch
        %419 = sbr.rel (%p417) target = $region40
      $region39: #{my_l2_loss.1} parent=31 // pred_region
        %v420 = vld [vmem:[#allocation2] sm:$0x3]
        %vm421 = vcmask 1041408
        %v422 = vsel %vm421, %v420, 0.0
        %v423 = vrot.slane %v422, 4
        %v424 = vadd.f32 %v422, %v423
        %v425 = vrot.slane %v424, 2
        %v426 = vadd.f32 %v424, %v425
        %v427 = vrot.slane %v426, 1
        %v428 = vadd.f32 %v426, %v427
        %429 = vst [vmem:[%s364] sm:$0x1] %v428
        %v430 = vld [vmem:[#allocation3] sm:$0x3]
        %v431 = vsel %vm421, %v430, 0.0
        %v432 = vrot.slane %v431, 4
        %v433 = vadd.f32 %v431, %v432
        %v434 = vrot.slane %v433, 2
        %v435 = vadd.f32 %v433, %v434
        %v436 = vrot.slane %v435, 1
        %v437 = vadd.f32 %v435, %v436
        %438 = vst [vmem:[%s370] sm:$0x1] %v437
      $region40: #{my_l2_loss.1} parent=31 // pred_fallthru
        _
      %p439 = scmp.lt.s32.totalorder %s21, 1
      %s440 = scalar_select %p439, %s21, 1
      %p441 = scmp.lt.s32.totalorder %s22, 0
      %s442 = scalar_select %p441, %s22, 0
      %s443 = sadd.s32 %s442, %s440
      %s444 = scalar_lea.vmem %s3, %s443
      %p445 = scmp.lt.s32.totalorder %s21, 1
      %s446 = scalar_select %p445, %s21, 1
      %p447 = scmp.lt.s32.totalorder %s22, 0
      %s448 = scalar_select %p447, %s22, 0
      %s449 = sadd.s32 %s448, %s446
      %s450 = scalar_lea.vmem %s4, %s449
      // Predicated region
      $region41: #{my_l2_loss.1} parent=31 // pred_check
        %p451 = pneg %p157
      $region42: #{my_l2_loss.1} parent=31 // pred_check_branch
        %453 = sbr.rel (%p451) target = $region44
      $region43: #{my_l2_loss.1} parent=31 // pred_region
        _
      $region44: #{my_l2_loss.1} parent=31 // pred_fallthru
        _
      // Predicated region
      $region45: #{my_l2_loss.1} parent=31 // pred_check
        %p454 = pneg %p185
      $region46: #{my_l2_loss.1} parent=31 // pred_check_branch
        %456 = sbr.rel (%p454) target = $region48
      $region47: #{my_l2_loss.1} parent=31 // pred_region
        _
      $region48: #{my_l2_loss.1} parent=31 // pred_fallthru
        _
    $region32: #{my_l2_loss.1} parent=5 // pred_fallthru
      _
    %p457 = scmp.le.s32.totalorder 2, %s11
    // Predicated region
    $region49: #{my_l2_loss.1} parent=5 // pred_check
      %p458 = pneg %p457
    $region50: #{my_l2_loss.1} parent=5 // pred_check_branch
      %460 = sbr.rel (%p458) target = $region52
    $region51: #{my_l2_loss.1} parent=5 // pred_region
      %s461 = ssub.s32 %s11, 2
      // Predicated region
      $region53: #{my_l2_loss.1} parent=51 // pred_check
        %p462 = pneg %p163
      $region54: #{my_l2_loss.1} parent=51 // pred_check_branch
        %464 = sbr.rel (%p462) target = $region56
      $region55: #{my_l2_loss.1} parent=51 // pred_region
        %p465 = scmp.lt.s32.totalorder %s24, 1
        %s466 = scalar_select %p465, %s24, 1
        %p467 = scmp.lt.s32.totalorder %s25, 0
        %s468 = scalar_select %p467, %s25, 0
        %s469 = sadd.s32 %s468, %s466
        %s470 = scalar_lea.vmem %s3, %s469
      $region56: #{my_l2_loss.1} parent=51 // pred_fallthru
        _
      // Predicated region
      $region57: #{my_l2_loss.1} parent=51 // pred_check
        %p471 = pneg %p191
      $region58: #{my_l2_loss.1} parent=51 // pred_check_branch
        %473 = sbr.rel (%p471) target = $region60
      $region59: #{my_l2_loss.1} parent=51 // pred_region
        %p474 = scmp.lt.s32.totalorder %s24, 1
        %s475 = scalar_select %p474, %s24, 1
        %p476 = scmp.lt.s32.totalorder %s25, 0
        %s477 = scalar_select %p476, %s25, 0
        %s478 = sadd.s32 %s477, %s475
        %s479 = scalar_lea.vmem %s4, %s478
      $region60: #{my_l2_loss.1} parent=51 // pred_fallthru
        _
    $region52: #{my_l2_loss.1} parent=5 // pred_fallthru
      _
  $region6: #{my_l2_loss.1} parent=0 // loop_footer
    %s15 = sadd.s32 1, %s11
  $region7: #{my_l2_loss.1} parent=0 // loop_footer_branch
    %10 = sbr.rel target = $region3
  $region8: #{my_l2_loss.1} parent=0 // loop_exit
    _

</llo_original>
